<compile_context>
chip_gen: v7x
topology: tpu7x:2x2x1
jax: 0.10.0
libtpu: 0.0.40
codegen_flags: <defaults>
</compile_context>

<pallas_src>
import functools

import jax
import jax.numpy as jnp
from jax import lax
from jax.experimental import pallas as pl
from jax.experimental.pallas import tpu as pltpu

LANE = 128
TARGET_BLOCK_BYTES = 2 * 1024 * 1024   # ~2 MiB per stream per pipeline buffer
VMEM_LIMIT_BYTES = 32 * 1024 * 1024    # safe on v5e/v6e (128 MiB) and v7x (64 MiB)
# Leading 'parallel' axis of the reduction grid; sized for v7x's 2 TensorCores.
# On 1-TC chips (v5e/v6e) the axis simply runs serially (one extra cheap chain).
NCORES = 2


def _choose_tile_rows(rows, itemsize):
    """Rows per block: ~TARGET_BLOCK_BYTES per stream, multiple of 32 (so bf16
    (16,128) / int8-fp8 (32,128) packing stays aligned), capped at the full
    array (a full-dims block is always a legal BlockSpec)."""
    target = TARGET_BLOCK_BYTES // (LANE * itemsize)
    target = max(32, (target // 32) * 32)
    return rows if rows <= target else target


# ----------------------------- kernels --------------------------------------
def _abs_diff(pred_ref, tgt_ref, w_ref):
    l = jnp.abs(pred_ref[...].astype(jnp.float32)
                - tgt_ref[...].astype(jnp.float32))
    if w_ref is not None:
        l = l * w_ref[...].astype(jnp.float32)
    return l


def _sum_kernel(pred_ref, tgt_ref, *rest, rows, tile_rows, nblocks, per_core,
                weighted):
    """Partial-sum kernel for reduction='mean'/'sum'.

    Grid = (ncores, per_core).  Each leading-axis instance owns a contiguous
    range of row-blocks and accumulates an (8, LANE) f32 partial directly into
    its resident output block (init at inner i == 0).  Reducing the partials
    to a scalar is deferred to the wrapper, keeping the hot loop pure VALU.
    """
    if weighted:
        w_ref, out_ref = rest
    else:
        (out_ref,) = rest
        w_ref = None

    c = pl.program_id(0)
    i = pl.program_id(1)
    g = c * per_core + i                     # global row-block index
    last = nblocks - 1
    ragged_rows = rows - last * tile_rows    # valid rows in the last block

    @pl.when(i == 0)
    def _():
        out_ref[...] = jnp.zeros_like(out_ref)

    def accumulate(l):
        if tile_rows % 8 == 0:
            # (tile_rows,128) -> (tile_rows//8, 8, 128); axis-0 reduce is pure
            # vreg adds (no cross-sublane XLU work per step).
            out_ref[...] += jnp.sum(l.reshape(tile_rows // 8, 8, LANE), axis=0)
        else:
            # Only happens for a single small full-array block.
            out_ref[0:1, :] += jnp.sum(l, axis=0, keepdims=True)

    @pl.when(g < last)
    def _():
        # Full interior block: no masking work at all.
        accumulate(_abs_diff(pred_ref, tgt_ref, w_ref))

    @pl.when(g == last)
    def _():
        l = _abs_diff(pred_ref, tgt_ref, w_ref)
        if ragged_rows != tile_rows:
            # Ragged last block: rows >= ragged_rows hold stale VMEM (never
            # DMA'd); mask is welded to this accumulate.
            rid = lax.broadcasted_iota(jnp.int32, l.shape, 0)
            l = jnp.where(rid < ragged_rows, l, 0.0)
        accumulate(l)
    # g > last: clamped dummy iteration on the trailing core (odd nblocks);
    # nothing accumulated.


def _elem_kernel(*refs, weighted, has_scale, static_scale):
    """Elementwise kernel for reduction='none'.

    A scalar weight (if any) arrives as a tiny (1,1) VMEM scalar; the static
    loss_weight is folded in as a compile-time constant.  Both avoid an extra
    full-size HBM pass in the wrapper.
    """
    k = 0
    scale_ref = None
    if has_scale:
        scale_ref = refs[k]; k += 1
    pred_ref, tgt_ref = refs[k], refs[k + 1]; k += 2
    w_ref = None
    if weighted:
        w_ref = refs[k]; k += 1
    loss_ref = refs[k]

    l = _abs_diff(pred_ref, tgt_ref, w_ref)
    if has_scale:
        l = l * (static_scale * scale_ref[0, 0])
    elif static_scale != 1.0:
        l = l * static_scale
    loss_ref[...] = l.astype(loss_ref.dtype)


# --------------------------- pallas_call wrappers ----------------------------
def _run_sum(pred2d, tgt2d, w2d, tile_rows):
    rows, _ = pred2d.shape
    nblocks = pl.cdiv(rows, tile_rows)
    ncores = min(NCORES, nblocks)
    per_core = pl.cdiv(nblocks, ncores)
    weighted = w2d is not None
    inputs = (pred2d, tgt2d) + ((w2d,) if weighted else ())

    def in_map(c, i):
        # Clamp so the trailing core's padded iteration (odd nblocks) DMAs a
        # valid block; the kernel gates off its accumulation.
        return (jnp.minimum(c * per_core + i, nblocks - 1), 0)

    spec = pl.BlockSpec((tile_rows, LANE), in_map)
    kernel = functools.partial(_sum_kernel, rows=rows, tile_rows=tile_rows,
                               nblocks=nblocks, per_core=per_core,
                               weighted=weighted)
    partials = pl.pallas_call(
        kernel,
        out_shape=jax.ShapeDtypeStruct((ncores * 8, LANE), jnp.float32),
        grid_spec=pltpu.PrefetchScalarGridSpec(
            num_scalar_prefetch=0,
            grid=(ncores, per_core),
            in_specs=[spec] * len(inputs),
            out_specs=pl.BlockSpec((8, LANE), lambda c, i: (c, 0)),
        ),
        compiler_params=pltpu.CompilerParams(
            dimension_semantics=("parallel", "arbitrary"),
            vmem_limit_bytes=VMEM_LIMIT_BYTES),
    )(*inputs)
    return jnp.sum(partials)   # tiny (ncores*8, 128) reduce in plain XLA


def _run_elem(pred2d, tgt2d, w2d, scale, tile_rows, out_dtype, loss_weight):
    rows, _ = pred2d.shape
    nblocks = pl.cdiv(rows, tile_rows)
    spec = pl.BlockSpec((tile_rows, LANE), lambda i: (i, 0))
    weighted = w2d is not None
    has_scale = scale is not None

    in_specs, inputs = [], []
    if has_scale:
        # (1,1) scalar block resident across the whole grid (single DMA).
        in_specs.append(pl.BlockSpec((1, 1), lambda i: (0, 0)))
        inputs.append(scale.reshape(1, 1).astype(jnp.float32))
    in_specs += [spec, spec]
    inputs += [pred2d, tgt2d]
    if weighted:
        in_specs.append(spec)
        inputs.append(w2d)

    kernel = functools.partial(_elem_kernel, weighted=weighted,
                               has_scale=has_scale,
                               static_scale=float(loss_weight))
    return pl.pallas_call(
        kernel,
        out_shape=jax.ShapeDtypeStruct((rows, LANE), out_dtype),
        grid_spec=pltpu.PrefetchScalarGridSpec(
            num_scalar_prefetch=0,
            grid=(nblocks,),
            in_specs=in_specs,
            out_specs=spec,
        ),
        compiler_params=pltpu.CompilerParams(
            dimension_semantics=("parallel",),   # blocks are independent
            vmem_limit_bytes=VMEM_LIMIT_BYTES),
    )(*inputs)


# ------------------------------ public API -----------------------------------
def l1_loss_pallas(pred, target, weight=None, reduction='mean',
                   avg_factor=None, loss_weight=1.0):
    assert reduction in ('none', 'mean', 'sum')

    if target.size == 0:
        # matches the torch branch: scalar 0.0 of pred dtype
        return jnp.asarray(0.0, dtype=pred.dtype)

    assert pred.shape == target.shape, \
        'Prediction and target must have the same size.'

    n = pred.size
    out_dtype = pred.dtype
    itemsize = jnp.dtype(pred.dtype).itemsize

    pred_f = pred.reshape(-1)
    tgt_f = target.reshape(-1)

    # Weight classification: full-shape weights stream through the kernel;
    # scalar weights never touch HBM as a stream (hoisted / (1,1) VMEM scalar).
    w_full, w_scalar = None, None
    if weight is not None:
        weight = jnp.asarray(weight)
        if weight.size == 1:
            w_scalar = weight.reshape(()).astype(jnp.float32)
        elif weight.shape == pred.shape:
            w_full = weight.reshape(-1)
        else:
            # TODO(synk): low-rank broadcast weights still materialize a full copy.
            w_full = jnp.broadcast_to(weight, pred.shape).reshape(-1)

    # Split into a lane-aligned main region (Pallas) and a <128-element tail
    # (plain JAX) so ragged sizes never force a full-array pad/copy.
    n_main = (n // LANE) * LANE
    n_tail = n - n_main
    rows = n_main // LANE

    def main_2d(x):
        x = x if n_tail == 0 else x[:n_main]
        return x.reshape(rows, LANE)

    def tail_loss_f32():
        lt = jnp.abs(pred_f[n_main:].astype(jnp.float32)
                     - tgt_f[n_main:].astype(jnp.float32))
        if w_full is not None:
            lt = lt * w_full[n_main:].astype(jnp.float32)
        return lt

    if reduction == 'none':
        parts = []
        if n_main:
            tile_rows = _choose_tile_rows(rows, itemsize)
            w2d = None if w_full is None else main_2d(w_full)
            loss2d = _run_elem(main_2d(pred_f), main_2d(tgt_f), w2d, w_scalar,
                               tile_rows, out_dtype, loss_weight)
            parts.append(loss2d.reshape(-1))
        if n_tail:
            lt = tail_loss_f32()
            if w_scalar is not None:
                lt = lt * w_scalar
            parts.append((lt * loss_weight).astype(out_dtype))
        flat = parts[0] if len(parts) == 1 else jnp.concatenate(parts)
        return flat.reshape(pred.shape)

    # 'mean' / 'sum' -> sum-only kernel (no elementwise HBM write)
    total = jnp.asarray(0.0, jnp.float32)
    if n_main:
        tile_rows = _choose_tile_rows(rows, itemsize)
        w2d = None if w_full is None else main_2d(w_full)
        total = _run_sum(main_2d(pred_f), main_2d(tgt_f), w2d, tile_rows)
    if n_tail:
        total = total + jnp.sum(tail_loss_f32())
    if w_scalar is not None:
        total = total * w_scalar   # scalar weight hoisted out of the kernel

    if reduction == 'mean':
        denom = float(n) if avg_factor is None else avg_factor
        reduced = (total / denom).astype(out_dtype)
    else:  # 'sum'
        if avg_factor is not None:
            raise ValueError('avg_factor can not be used with reduction="sum"')
        reduced = total.astype(out_dtype)
    return loss_weight * reduced


class L1Loss:
    """JAX/Pallas port of the PyTorch L1Loss module (forward pass)."""

    def __init__(self, reduction='mean', loss_weight=1.0):
        self.reduction = reduction
        self.loss_weight = loss_weight

    def __call__(self, pred, target, weight=None, avg_factor=None,
                 reduction_override=None):
        assert reduction_override in (None, 'none', 'mean', 'sum')
        reduction = reduction_override if reduction_override else self.reduction
        return l1_loss_pallas(pred, target, weight=weight, reduction=reduction,
                              avg_factor=avg_factor, loss_weight=self.loss_weight)


if __name__ == "__main__":
    key = jax.random.PRNGKey(0)
    k1, k2, k3, k4, k5, k6, k7, k8, k9 = jax.random.split(key, 9)

    # NCHW-shaped predictions / targets (layout is flattened inside the wrapper)
    pred = jax.random.normal(k1, (2, 4, 16, 16), dtype=jnp.float32)
    target = jax.random.normal(k2, (2, 4, 16, 16), dtype=jnp.float32)
    weight = jax.random.uniform(k3, (2, 4, 16, 16), dtype=jnp.float32)

    module = L1Loss(reduction='mean', loss_weight=1.0)

    out_mean = jax.block_until_ready(module(pred, target))
    out_sum = jax.block_until_ready(module(pred, target, reduction_override='sum'))
    out_none = jax.block_until_ready(module(pred, target, reduction_override='none'))
    out_w = jax.block_until_ready(module(pred, target, weight=weight, avg_factor=100))
    out_wn = jax.block_until_ready(
        module(pred, target, weight=weight, reduction_override='none'))

    ref_elem = jnp.abs(pred - target)
    assert jnp.allclose(out_mean, ref_elem.mean(), rtol=1e-5, atol=1e-5)
    assert jnp.allclose(out_sum, ref_elem.sum(), rtol=1e-5, atol=1e-4)
    assert jnp.allclose(out_none, ref_elem, rtol=1e-6, atol=1e-6)
    assert jnp.allclose(out_w, (ref_elem * weight).sum() / 100, rtol=1e-5, atol=1e-5)
    assert jnp.allclose(out_wn, ref_elem * weight, rtol=1e-6, atol=1e-6)

    # Scalar weight: hoisted on 'mean'/'sum', in-kernel (1,1) scalar on 'none'.
    w_sc = jnp.asarray(0.5, dtype=jnp.float32)
    out_sc_mean = jax.block_until_ready(module(pred, target, weight=w_sc))
    out_sc_none = jax.block_until_ready(
        module(pred, target, weight=w_sc, reduction_override='none'))
    assert jnp.allclose(out_sc_mean, (ref_elem * 0.5).mean(), rtol=1e-5, atol=1e-5)
    assert jnp.allclose(out_sc_none, ref_elem * 0.5, rtol=1e-6, atol=1e-6)

    # loss_weight folded into the elementwise kernel (no extra wrapper pass).
    module_lw = L1Loss(reduction='none', loss_weight=2.0)
    out_lw = jax.block_until_ready(module_lw(pred, target))
    assert jnp.allclose(out_lw, 2.0 * ref_elem, rtol=1e-6, atol=1e-6)

    # bf16 inputs exercise the dtype-aware tile sizing.
    p_bf = pred.astype(jnp.bfloat16)
    t_bf = target.astype(jnp.bfloat16)
    out_bf = jax.block_until_ready(module(p_bf, t_bf, reduction_override='none'))
    ref_bf = jnp.abs(p_bf.astype(jnp.float32) - t_bf.astype(jnp.float32)).astype(jnp.bfloat16)
    assert jnp.allclose(out_bf.astype(jnp.float32), ref_bf.astype(jnp.float32),
                        rtol=1e-2, atol=1e-2)

    # Multi-block reduction: rows=9000 -> 3 blocks of 4096 -> exercises the
    # two-'core' split (parallel leading axis), the clamped trailing iteration
    # (odd block count) and the ragged last block mask.
    p_big = jax.random.normal(k4, (45, 200, 128), dtype=jnp.float32)
    t_big = jax.random.normal(k5, (45, 200, 128), dtype=jnp.float32)
    out_big = jax.block_until_ready(module(p_big, t_big, reduction_override='sum'))
    assert jnp.allclose(out_big, jnp.abs(p_big - t_big).sum(), rtol=1e-4, atol=1e-1)

    # Small ragged case: n = 1290 (not a multiple of 128) -> lane-aligned main
    # region through Pallas plus a 10-element JAX tail (no full-array pad).
    p_r = jax.random.normal(k6, (3, 5, 86), dtype=jnp.float32)
    t_r = jax.random.normal(k7, (3, 5, 86), dtype=jnp.float32)
    out_r_sum = jax.block_until_ready(module(p_r, t_r, reduction_override='sum'))
    out_r_none = jax.block_until_ready(module(p_r, t_r, reduction_override='none'))
    assert jnp.allclose(out_r_sum, jnp.abs(p_r - t_r).sum(), rtol=1e-5, atol=1e-4)
    assert jnp.allclose(out_r_none, jnp.abs(p_r - t_r), rtol=1e-6, atol=1e-6)

    # Tiny case (< 128 elements): handled entirely by the JAX tail path.
    p_t = jax.random.normal(k8, (3, 7), dtype=jnp.float32)
    t_t = jax.random.normal(k9, (3, 7), dtype=jnp.float32)
    out_t_sum = jax.block_until_ready(module(p_t, t_t, reduction_override='sum'))
    out_t_none = jax.block_until_ready(module(p_t, t_t, reduction_override='none'))
    assert jnp.allclose(out_t_sum, jnp.abs(p_t - t_t).sum(), rtol=1e-5, atol=1e-5)
    assert jnp.allclose(out_t_none, jnp.abs(p_t - t_t), rtol=1e-6, atol=1e-6)

    print("KERNEL_OK")
</pallas_src>

<mosaic_0001>
module attributes {stable_mosaic.version = 11 : i64} {
  func.func @_sum_kernel(%arg0: i32, %arg1: i32, %arg2: memref<16x128xf32, #tpu.memory_space<vmem>>, %arg3: memref<16x128xf32, #tpu.memory_space<vmem>>, %arg4: memref<8x128xf32, #tpu.memory_space<vmem>>) attributes {dimension_semantics = [#tpu.dimension_semantics<parallel>, #tpu.dimension_semantics<arbitrary>], iteration_bounds = array<i64: 1, 1>, scalar_prefetch = 0 : i64, scratch_operands = 0 : i64, tpu.core_type = #tpu.core_type<tc>, window_params = [{transform_indices = @transform_0, window_bounds = array<i64: 16, 128>}, {transform_indices = @transform_1, window_bounds = array<i64: 16, 128>}, {transform_indices = @transform_2, window_bounds = array<i64: 8, 128>}]} {
    %c1_i32 = arith.constant 1 : i32
    %0 = arith.muli %arg0, %c1_i32 : i32
    %1 = arith.addi %0, %arg1 : i32
    %c0_i32 = arith.constant 0 : i32
    %2 = arith.cmpi eq, %arg1, %c0_i32 : i32
    %3 = arith.extui %2 : i1 to i32
    %c0_i32_0 = arith.constant 0 : i32
    %4 = arith.cmpi ne, %3, %c0_i32_0 : i32
    scf.if %4 {
      %cst = arith.constant 0.000000e+00 : f32
      %11 = vector.broadcast %cst : f32 to vector<8x128xf32>
      %c0 = arith.constant 0 : index
      %c0_5 = arith.constant 0 : index
      %12 = vector.load %arg4[%c0, %c0_5] : memref<8x128xf32, #tpu.memory_space<vmem>>, vector<8x128xf32>
      tpu.vector_store %arg4[%c0, %c0_5], %11 {strides = array<i32>} : memref<8x128xf32, #tpu.memory_space<vmem>>, vector<8x128xf32>,
    } else {
    }
    %c0_i32_1 = arith.constant 0 : i32
    %5 = arith.cmpi slt, %1, %c0_i32_1 : i32
    %6 = arith.extui %5 : i1 to i32
    %c0_i32_2 = arith.constant 0 : i32
    %7 = arith.cmpi ne, %6, %c0_i32_2 : i32
    scf.if %7 {
      %c0 = arith.constant 0 : index
      %c0_5 = arith.constant 0 : index
      %11 = vector.load %arg2[%c0, %c0_5] : memref<16x128xf32, #tpu.memory_space<vmem>>, vector<16x128xf32>
      %c0_6 = arith.constant 0 : index
      %c0_7 = arith.constant 0 : index
      %12 = vector.load %arg3[%c0_6, %c0_7] : memref<16x128xf32, #tpu.memory_space<vmem>>, vector<16x128xf32>
      %13 = arith.subf %11, %12 : vector<16x128xf32>
      %14 = math.absf %13 : vector<16x128xf32>
      %c0_8 = arith.constant 0 : index
      %c0_9 = arith.constant 0 : index
      %15 = vector.load %arg4[%c0_8, %c0_9] : memref<8x128xf32, #tpu.memory_space<vmem>>, vector<8x128xf32>
      %16 = vector.shape_cast %14 : vector<16x128xf32> to vector<2x8x128xf32>
      %cst = arith.constant dense<0.000000e+00> : vector<8x128xf32>
      %17 = vector.multi_reduction <add>, %16, %cst [0] : vector<2x8x128xf32> to vector<8x128xf32>
      %18 = arith.addf %15, %17 : vector<8x128xf32>
      %c0_10 = arith.constant 0 : index
      %c0_11 = arith.constant 0 : index
      %19 = vector.load %arg4[%c0_10, %c0_11] : memref<8x128xf32, #tpu.memory_space<vmem>>, vector<8x128xf32>
      tpu.vector_store %arg4[%c0_10, %c0_11], %18 {strides = array<i32>} : memref<8x128xf32, #tpu.memory_space<vmem>>, vector<8x128xf32>,
    } else {
    }
    %c0_i32_3 = arith.constant 0 : i32
    %8 = arith.cmpi eq, %1, %c0_i32_3 : i32
    %9 = arith.extui %8 : i1 to i32
    %c0_i32_4 = arith.constant 0 : i32
    %10 = arith.cmpi ne, %9, %c0_i32_4 : i32
    scf.if %10 {
      %c0 = arith.constant 0 : index
      %c0_5 = arith.constant 0 : index
      %11 = vector.load %arg2[%c0, %c0_5] : memref<16x128xf32, #tpu.memory_space<vmem>>, vector<16x128xf32>
      %c0_6 = arith.constant 0 : index
      %c0_7 = arith.constant 0 : index
      %12 = vector.load %arg3[%c0_6, %c0_7] : memref<16x128xf32, #tpu.memory_space<vmem>>, vector<16x128xf32>
      %13 = arith.subf %11, %12 : vector<16x128xf32>
      %14 = math.absf %13 : vector<16x128xf32>
      %c0_8 = arith.constant 0 : index
      %c0_9 = arith.constant 0 : index
      %15 = vector.load %arg4[%c0_8, %c0_9] : memref<8x128xf32, #tpu.memory_space<vmem>>, vector<8x128xf32>
      %16 = vector.shape_cast %14 : vector<16x128xf32> to vector<2x8x128xf32>
      %cst = arith.constant dense<0.000000e+00> : vector<8x128xf32>
      %17 = vector.multi_reduction <add>, %16, %cst [0] : vector<2x8x128xf32> to vector<8x128xf32>
      %18 = arith.addf %15, %17 : vector<8x128xf32>
      %c0_10 = arith.constant 0 : index
      %c0_11 = arith.constant 0 : index
      %19 = vector.load %arg4[%c0_10, %c0_11] : memref<8x128xf32, #tpu.memory_space<vmem>>, vector<8x128xf32>
      tpu.vector_store %arg4[%c0_10, %c0_11], %18 {strides = array<i32>} : memref<8x128xf32, #tpu.memory_space<vmem>>, vector<8x128xf32>,
    } else {
    }
    return
  }
  func.func @transform_0(%arg0: i32, %arg1: i32) -> (i32, i32) {
    %c1_i32 = arith.constant 1 : i32
    %0 = arith.muli %arg0, %c1_i32 : i32
    %1 = arith.addi %0, %arg1 : i32
    %c0_i32 = arith.constant 0 : i32
    %2 = arith.minsi %1, %c0_i32 : i32
    %c0_i32_0 = arith.constant 0 : i32
    %c0_i32_1 = arith.constant 0 : i32
    return %2, %c0_i32_0 : i32, i32
  }
  func.func @transform_1(%arg0: i32, %arg1: i32) -> (i32, i32) {
    %c1_i32 = arith.constant 1 : i32
    %0 = arith.muli %arg0, %c1_i32 : i32
    %1 = arith.addi %0, %arg1 : i32
    %c0_i32 = arith.constant 0 : i32
    %2 = arith.minsi %1, %c0_i32 : i32
    %c0_i32_0 = arith.constant 0 : i32
    %c0_i32_1 = arith.constant 0 : i32
    return %2, %c0_i32_0 : i32, i32
  }
  func.func @transform_2(%arg0: i32, %arg1: i32) -> (i32, i32) {
    %c0_i32 = arith.constant 0 : i32
    %c0_i32_0 = arith.constant 0 : i32
    return %arg0, %c0_i32 : i32, i32
  }
}

</mosaic_0001>

<llo_original>
// kernel: tpu_custom_call.1
$region0: #{tpu_custom_call.1}
  #allocation0 [shape = 'u32[]', space=smem, size = 0x4, offset = 0x4, fixed_abs, tag = 'smem constant byte address 0x4 - core index']
  #allocation1 [shape = 'u32[144,128]{1,0:T(1,128)}', space=vmem, size = 0x12000, scoped, tag = 'internal scratch']
  %s0 = inlined_call_operand.hbm [shape: f32[16,128], index: 0, kind: input, shape index: {}]
  %s1 = inlined_call_operand.hbm [shape: f32[16,128], index: 1, kind: input, shape index: {}]
  %s2 = inlined_call_operand.hbm [shape: f32[8,128], index: 2, kind: output, shape index: {}]
  %s3 = sld [smem:[#allocation0]]
  $region38: #{tpu_custom_call.1} parent=0
    _
  %s5 = ssub.s32 1, %s3
  %s6 = scalar_select 0, %s5, %s3
  $region1: #{tpu_custom_call.1} parent=0
    #allocation2 [shape = 'u8[8192]{0}', space=vmem, size = 0x2000, scoped, tag = 'input window, operand 0, single buffered']
    #allocation3 [shape = 's32[1]{0}', space=sflag, size = 0x4, scoped, tag = 'scoped memory for tpu_custom_call.1']
    #allocation4 [shape = 's32[1]{0}', space=sflag, size = 0x4, scoped, tag = 'scoped memory for tpu_custom_call.1']
    #allocation5 [shape = 'u8[8192]{0}', space=vmem, size = 0x2000, scoped, tag = 'input window, operand 1, single buffered']
    #allocation6 [shape = 's32[1]{0}', space=sflag, size = 0x4, scoped, tag = 'scoped memory for tpu_custom_call.1']
    #allocation7 [shape = 'u8[4096]{0}', space=vmem, size = 0x1000, scoped, tag = 'output window, operand 0, single buffered']
    %7 = vsyncpa [#allocation3], 0
    %8 = vsyncpa [#allocation6], 0
    %9 = vsyncpa [#allocation4], 0
    // Predicated region
    $region2: #{tpu_custom_call.1} parent=1 // pred_check
      _
    $region3: #{tpu_custom_call.1} parent=1 // pred_check_branch
      %11 = sbr.rel (0) target = $region5
    $region4: #{tpu_custom_call.1} parent=1 // pred_region
      %s12 = sadd.s32 0, 0
      %p13 = scmp.lt.s32.totalorder %s12, 0
      %s14 = scalar_select %p13, %s12, 0
      %s15 = smul.u32 2, %s14
      %s17 = ssub.s32 256, 256
      %18 = vsyncadd [#allocation3], %s17
      %s19 = smul.addr %s15, 128
      %s20 = scalar_lea.hbm %s0, %s19
      %s21 = sshll.u32 [#allocation2], 4
      %s22 = int_to_ptr.vmem [resolvable:$true] %s21
      %27 = dma.hbm_to_vmem [thread:$0]  %s20, 256, %s22, [#allocation3], 128, 128, 8
    $region5: #{tpu_custom_call.1} parent=1 // pred_fallthru
      _
    // Predicated region
    $region6: #{tpu_custom_call.1} parent=1 // pred_check
      _
    $region7: #{tpu_custom_call.1} parent=1 // pred_check_branch
      %29 = sbr.rel (0) target = $region9
    $region8: #{tpu_custom_call.1} parent=1 // pred_region
      %s30 = sadd.s32 0, 0
      %p31 = scmp.lt.s32.totalorder %s30, 0
      %s32 = scalar_select %p31, %s30, 0
      %s33 = smul.u32 2, %s32
      %s35 = ssub.s32 256, 256
      %36 = vsyncadd [#allocation6], %s35
      %s37 = smul.addr %s33, 128
      %s38 = scalar_lea.hbm %s1, %s37
      %s39 = sshll.u32 [#allocation5], 4
      %s40 = int_to_ptr.vmem [resolvable:$true] %s39
      %45 = dma.hbm_to_vmem [thread:$0]  %s38, 256, %s40, [#allocation6], 128, 128, 8
    $region9: #{tpu_custom_call.1} parent=1 // pred_fallthru
      _
    // Predicated region
    $region10: #{tpu_custom_call.1} parent=1 // pred_check
      _
    $region11: #{tpu_custom_call.1} parent=1 // pred_check_branch
      %47 = sbr.rel (0) target = $region13
    $region12: #{tpu_custom_call.1} parent=1 // pred_region
      %48 = dma.done [#allocation3], 256
    $region13: #{tpu_custom_call.1} parent=1 // pred_fallthru
      _
    // Predicated region
    $region14: #{tpu_custom_call.1} parent=1 // pred_check
      _
    $region15: #{tpu_custom_call.1} parent=1 // pred_check_branch
      %50 = sbr.rel (0) target = $region17
    $region16: #{tpu_custom_call.1} parent=1 // pred_region
      %51 = dma.done [#allocation6], 256
    $region17: #{tpu_custom_call.1} parent=1 // pred_fallthru
      _
    %s52 = sadd.s32 0, 0
    %p53 = scmp.lt.s32.totalorder %s52, 0
    %s54 = scalar_select %p53, %s52, 0
    %s55 = smul.u32 2, %s54
    %s56 = sadd.s32 0, 0
    %p57 = scmp.lt.s32.totalorder %s56, 0
    %s58 = scalar_select %p57, %s56, 0
    %s59 = smul.u32 2, %s58
    %s60 = sadd.s32 0, 0
    %p61 = scmp.eq.s32.totalorder 0, 0
    // Predicated region
    $region18: #{tpu_custom_call.1} parent=1 // pred_check
      %p62 = pneg %p61
    $region19: #{tpu_custom_call.1} parent=1 // pred_check_branch
      %64 = sbr.rel (%p62) target = $region21
    $region20: #{tpu_custom_call.1} parent=1 // pred_region
      %65 = vst [vmem:[#allocation7] sm:$0xff] 0.0
    $region21: #{tpu_custom_call.1} parent=1 // pred_fallthru
      _
    %p66 = scmp.lt.s32.totalorder %s60, 0
    // Predicated region
    $region22: #{tpu_custom_call.1} parent=1 // pred_check
      %p67 = pneg %p66
    $region23: #{tpu_custom_call.1} parent=1 // pred_check_branch
      %69 = sbr.rel (%p67) target = $region25
    $region24: #{tpu_custom_call.1} parent=1 // pred_region
      %v70 = vld [vmem:[#allocation2] sm:$0xff]
      %v71 = vld [vmem:[#allocation2 + $0x8] sm:$0xff]
      %v72 = vld [vmem:[#allocation5] sm:$0xff]
      %v73 = vld [vmem:[#allocation5 + $0x8] sm:$0xff]
      %v74 = vsub.f32 %v70, %v72
      %v75 = vsub.f32 %v71, %v73
      %v76 = vand.u32 2147483647, %v74
      %v77 = vand.u32 2147483647, %v75
      %v78 = vld [vmem:[#allocation7] sm:$0xff]
      %v79 = vadd.f32 %v76, %v77
      %v80 = vadd.f32 %v78, %v79
      %81 = vst [vmem:[#allocation7] sm:$0xff] %v80
    $region25: #{tpu_custom_call.1} parent=1 // pred_fallthru
      _
    %p82 = scmp.eq.s32.totalorder %s60, 0
    // Predicated region
    $region26: #{tpu_custom_call.1} parent=1 // pred_check
      %p83 = pneg %p82
    $region27: #{tpu_custom_call.1} parent=1 // pred_check_branch
      %85 = sbr.rel (%p83) target = $region29
    $region28: #{tpu_custom_call.1} parent=1 // pred_region
      %v86 = vld [vmem:[#allocation2] sm:$0xff]
      %v87 = vld [vmem:[#allocation2 + $0x8] sm:$0xff]
      %v88 = vld [vmem:[#allocation5] sm:$0xff]
      %v89 = vld [vmem:[#allocation5 + $0x8] sm:$0xff]
      %v90 = vsub.f32 %v86, %v88
      %v91 = vsub.f32 %v87, %v89
      %v92 = vand.u32 2147483647, %v90
      %v93 = vand.u32 2147483647, %v91
      %v94 = vld [vmem:[#allocation7] sm:$0xff]
      %v95 = vadd.f32 %v92, %v93
      %v96 = vadd.f32 %v94, %v95
      %97 = vst [vmem:[#allocation7] sm:$0xff] %v96
    $region29: #{tpu_custom_call.1} parent=1 // pred_fallthru
      _
    // Predicated region
    $region30: #{tpu_custom_call.1} parent=1 // pred_check
      _
    $region31: #{tpu_custom_call.1} parent=1 // pred_check_branch
      %99 = sbr.rel (0) target = $region33
    $region32: #{tpu_custom_call.1} parent=1 // pred_region
      %s101 = ssub.s32 128, 128
      %102 = vsyncadd [#allocation4], %s101
      %s104 = sshll.u32 [#allocation7], 4
      %s105 = int_to_ptr.vmem [resolvable:$true] %s104
      %107 = dma.vmem_to_hbm [thread:$0]  %s105, 128, %s2, [#allocation4]
    $region33: #{tpu_custom_call.1} parent=1 // pred_fallthru
      _
    // Predicated region
    $region34: #{tpu_custom_call.1} parent=1 // pred_check
      _
    $region35: #{tpu_custom_call.1} parent=1 // pred_check_branch
      %109 = sbr.rel (0) target = $region37
    $region36: #{tpu_custom_call.1} parent=1 // pred_region
      %110 = dma.done [#allocation4], 128
    $region37: #{tpu_custom_call.1} parent=1 // pred_fallthru
      _
    %111 = vsyncpa [#allocation3], 1
    %112 = vsyncpa [#allocation6], 1
    %113 = vsyncpa [#allocation4], 1

</llo_original>
